<compile_context>
chip_gen: v6e
topology: v6e:2x2x1
jax: 0.10.0
libtpu: 0.0.40
codegen_flags: <defaults>
</compile_context>

<pallas_src>
import functools
import math

import jax
import jax.numpy as jnp
from jax.experimental import pallas as pl
from jax.experimental.pallas import tpu as pltpu

PI = 0.5
SIGMA_1 = math.exp(-0.0)   # 1.0
SIGMA_2 = math.exp(-6.0)
LOG_SQRT_2PI = math.log(math.sqrt(2.0 * math.pi))

# Compile-time constants for the log-space scale-mixture prior:
#   log p(v) = log(PI*C1) - K1*v^2 + log1p( R * exp(-(K2-K1)*v^2) )
LOG_PI_C1 = math.log(PI) - LOG_SQRT_2PI - math.log(SIGMA_1)
K1 = 1.0 / (2.0 * SIGMA_1 ** 2)
K2 = 1.0 / (2.0 * SIGMA_2 ** 2)
DK = K2 - K1
MIX_R = ((1.0 - PI) / PI) * (SIGMA_1 / SIGMA_2)


def _round_up(x, m):
    return (x + m - 1) // m * m


def _cdiv(a, b):
    return -(-a // b)


def _pick_tile(dim, want, align=128):
    """Largest tile <= `want` that is a multiple of `align` and <= dim.

    Dims smaller than `align` use a single full-dim block (allowed by the
    (8,128) rule), so no host-side padding is ever required.
    """
    if dim <= align:
        return dim
    return max(align, min(want, (dim // align) * align))


def _softplus(x):
    # Numerically stable softplus: one exp + one log1p (EUP), select/abs on VPU.
    return jnp.maximum(x, 0.0) + jnp.log1p(jnp.exp(-jnp.abs(x)))


def _mixture_logprob(v):
    # Scale-mixture-of-Gaussians log pdf in log-space (single exp + log1p).
    v2 = v * v
    return LOG_PI_C1 - K1 * v2 + jnp.log1p(MIX_R * jnp.exp(-DK * v2))


def bayesian_linear_kernel(x_ref, wmu_ref, wrho_ref, weps_ref,
                           bmu_ref, brho_ref, beps_ref,
                           y_ref, lp_ref, lvp_ref,
                           acc_ref, lp_acc_ref, lvp_acc_ref,
                           *, out_features, in_features,
                           tile_out, tile_in, matmul_dtype):
    o = pl.program_id(0)          # out_features tile index ("parallel")
    k = pl.program_id(1)          # in_features  tile index ("arbitrary" reduction)
    nk = pl.num_programs(1)

    # Compile-time edge flags: aligned layers skip all mask construction.
    row_edge = (out_features % tile_out) != 0
    col_edge = (in_features % tile_in) != 0

    f32 = jnp.float32
    wmu = wmu_ref[...].astype(f32)
    wrho = wrho_ref[...].astype(f32)
    weps = weps_ref[...].astype(f32)

    # ---- reparameterized weight sample for this tile ----
    w_sigma = _softplus(wrho)
    w = wmu + w_sigma * weps                      # (tile_out, tile_in)

    row_ok = None
    col_ok = None
    if row_edge:
        rows = jax.lax.broadcasted_iota(jnp.int32, w.shape, 0) + o * tile_out
        row_ok = rows < out_features
    if col_edge:
        cols = jax.lax.broadcasted_iota(jnp.int32, w.shape, 1) + k * tile_in
        col_ok = cols < in_features

    # ---- MXU partial product for this K slice: (B, TI) x (TO, TI)^T -> (B, TO) ----
    # Edge K columns of BOTH operands are zeroed so undefined (possibly NaN/Inf)
    # edge-block contents never reach the accumulator.  Garbage rows (o edge) only
    # pollute output columns that the masked writeback drops.
    x = x_ref[...].astype(f32)
    if col_edge:
        w_mm = jnp.where(col_ok, w, 0.0)
        xcols = jax.lax.broadcasted_iota(jnp.int32, x.shape, 1) + k * tile_in
        x_mm = jnp.where(xcols < in_features, x, 0.0)
    else:
        w_mm, x_mm = w, x
    partial = jax.lax.dot_general(
        x_mm.astype(matmul_dtype), w_mm.astype(matmul_dtype),
        dimension_numbers=(((1,), (1,)), ((), ())),
        preferred_element_type=jnp.float32)

    # ---- init accumulators once per output tile ----
    @pl.when(k == 0)
    def _():
        acc_ref[...] = jnp.zeros_like(acc_ref)
        lp_acc_ref[...] = jnp.zeros_like(lp_acc_ref)
        lvp_acc_ref[...] = jnp.zeros_like(lvp_acc_ref)

    acc_ref[...] += partial

    # ---- weight-tile log probs (masked only at ragged edges) ----
    # Reparameterization identity: (w - mu)^2 / (2 sigma^2) == eps^2 / 2.
    lvp_w = -LOG_SQRT_2PI - jnp.log(w_sigma) - 0.5 * weps * weps
    lp_w = _mixture_logprob(w)
    if row_edge and col_edge:
        valid = row_ok & col_ok
    elif row_edge:
        valid = row_ok
    elif col_edge:
        valid = col_ok
    else:
        valid = None
    if valid is not None:
        lvp_w = jnp.where(valid, lvp_w, 0.0)
        lp_w = jnp.where(valid, lp_w, 0.0)

    # Partial reduce over the sublane axis only (cheap), accumulate as a (1, TI)
    # vector: no per-step full cross-lane reduce, no serial scalar chain.
    lp_acc_ref[...] += jnp.sum(lp_w, axis=0, keepdims=True)
    lvp_acc_ref[...] += jnp.sum(lvp_w, axis=0, keepdims=True)

    # ---- finalize this output tile at the last K step ----
    @pl.when(k == nk - 1)
    def _():
        bmu = bmu_ref[...].astype(f32)
        brho = brho_ref[...].astype(f32)
        beps = beps_ref[...].astype(f32)
        b_sigma = _softplus(brho)
        b = bmu + b_sigma * beps                              # (1, tile_out)
        y_ref[...] = (acc_ref[...] + b).astype(y_ref.dtype)

        lvp_b = -LOG_SQRT_2PI - jnp.log(b_sigma) - 0.5 * beps * beps
        lp_b = _mixture_logprob(b)
        if row_edge:
            bcols = jax.lax.broadcasted_iota(jnp.int32, b.shape, 1) + o * tile_out
            b_ok = bcols < out_features
            lvp_b = jnp.where(b_ok, lvp_b, 0.0)
            lp_b = jnp.where(b_ok, lp_b, 0.0)

        lp_total = jnp.sum(lp_acc_ref[...]) + jnp.sum(lp_b)
        lvp_total = jnp.sum(lvp_acc_ref[...]) + jnp.sum(lvp_b)
        lp_ref[...] = jnp.broadcast_to(lp_total, lp_ref.shape)
        lvp_ref[...] = jnp.broadcast_to(lvp_total, lvp_ref.shape)


def bayesian_linear(x, w_mu, w_rho, w_eps, b_mu, b_rho, b_eps,
                    *, tile_out=512, tile_in=1024, use_bf16_matmul=False):
    """Returns (output, log_prior, log_variational_posterior).

    Inputs are streamed as-is (no host-side padding / casting); w_rho / w_eps may be
    passed in bf16 to reduce HBM traffic (the kernel upcasts to f32 internally).
    """
    B, IN = x.shape
    OUT = w_mu.shape[0]

    TO = _pick_tile(OUT, tile_out)
    TI = _pick_tile(IN, tile_in)
    # v7x megacore: keep >= 2 blocks on the "parallel" out axis so both
    # TensorCores get work (harmless single extra grid step on v5e/v6e).
    if OUT >= 256 and _cdiv(OUT, TO) < 2:
        TO = _round_up(_cdiv(OUT, 2), 128)
    n_out = _cdiv(OUT, TO)
    n_in = _cdiv(IN, TI)

    b_mu2 = b_mu.reshape(1, OUT)
    b_rho2 = b_rho.reshape(1, OUT)
    b_eps2 = b_eps.reshape(1, OUT)

    kernel = functools.partial(
        bayesian_linear_kernel,
        out_features=OUT, in_features=IN,
        tile_out=TO, tile_in=TI,
        matmul_dtype=jnp.bfloat16 if use_bf16_matmul else jnp.float32)

    grid_spec = pltpu.PrefetchScalarGridSpec(
        num_scalar_prefetch=0,
        grid=(n_out, n_in),
        in_specs=[
            # TODO(synk): for very large B, keep x fully resident (or add a batch
            # grid axis) instead of re-streaming it once per out-tile.
            pl.BlockSpec((B, TI), lambda o, k: (0, k)),       # x (K-tiled, full batch)
            pl.BlockSpec((TO, TI), lambda o, k: (o, k)),      # w_mu
            pl.BlockSpec((TO, TI), lambda o, k: (o, k)),      # w_rho
            pl.BlockSpec((TO, TI), lambda o, k: (o, k)),      # w_eps
            pl.BlockSpec((1, TO), lambda o, k: (0, o)),       # b_mu
            pl.BlockSpec((1, TO), lambda o, k: (0, o)),       # b_rho
            pl.BlockSpec((1, TO), lambda o, k: (0, o)),       # b_eps
        ],
        out_specs=(
            pl.BlockSpec((B, TO), lambda o, k: (0, o)),       # y (resident over k)
            pl.BlockSpec((8, 128), lambda o, k: (o, 0)),      # per-o-tile log_prior
            pl.BlockSpec((8, 128), lambda o, k: (o, 0)),      # per-o-tile log_var_post
        ),
        scratch_shapes=[
            pltpu.VMEM((B, TO), jnp.float32),                 # y accumulator
            pltpu.VMEM((1, TI), jnp.float32),                 # log_prior partials
            pltpu.VMEM((1, TI), jnp.float32),                 # log_var_post partials
        ],
    )

    # Explicit VMEM budget for the chosen tiles: double-buffered blocks + scratch
    # + headroom, capped at 64 MiB (v7x physical; v5e/v6e have 128 MiB physical).
    isz = lambda a: jnp.dtype(a.dtype).itemsize
    blk_bytes = (TO * TI * (isz(w_mu) + isz(w_rho) + isz(w_eps))
                 + B * TI * isz(x)
                 + TO * (isz(b_mu) + isz(b_rho) + isz(b_eps))
                 + B * TO * 4 + 2 * 8 * 128 * 4)
    scratch_bytes = B * TO * 4 + 2 * TI * 4
    vmem_limit = int(min(64 * 1024 * 1024,
                         2 * blk_bytes + scratch_bytes + (16 << 20)))

    y, lp_part, lvp_part = pl.pallas_call(
        kernel,
        out_shape=(
            jax.ShapeDtypeStruct((B, OUT), jnp.float32),
            jax.ShapeDtypeStruct((n_out * 8, 128), jnp.float32),
            jax.ShapeDtypeStruct((n_out * 8, 128), jnp.float32),
        ),
        grid_spec=grid_spec,
        compiler_params=pltpu.CompilerParams(
            dimension_semantics=("parallel", "arbitrary"),
            vmem_limit_bytes=vmem_limit),
        cost_estimate=pl.CostEstimate(
            flops=int(2 * B * IN * OUT + 15 * OUT * IN),
            transcendentals=int(5 * (OUT * IN + OUT)),
            bytes_accessed=int(OUT * IN * (isz(w_mu) + isz(w_rho) + isz(w_eps))
                               + isz(x) * B * IN * n_out
                               + 4 * (B * OUT + 2 * n_out * 8 * 128)
                               + 3 * 4 * OUT)),
    )(x, w_mu, w_rho, w_eps, b_mu2, b_rho2, b_eps2)

    log_prior = jnp.sum(lp_part[::8, 0])
    log_var_post = jnp.sum(lvp_part[::8, 0])
    return y, log_prior, log_var_post


def _reference(x, w_mu, w_rho, w_eps, b_mu, b_rho, b_eps):
    # Pure-JAX mirror of the PyTorch module's math (exp+exp+log mixture, explicit quad form).
    w_sigma = jnp.log1p(jnp.exp(w_rho))
    b_sigma = jnp.log1p(jnp.exp(b_rho))
    w = w_mu + w_sigma * w_eps
    b = b_mu + b_sigma * b_eps

    def glp(v, mu, s):
        return -LOG_SQRT_2PI - jnp.log(s) - (v - mu) ** 2 / (2 * s ** 2)

    def mix(v):
        p1 = jnp.exp(-LOG_SQRT_2PI - math.log(SIGMA_1) - v ** 2 / (2 * SIGMA_1 ** 2))
        p2 = jnp.exp(-LOG_SQRT_2PI - math.log(SIGMA_2) - v ** 2 / (2 * SIGMA_2 ** 2))
        return jnp.log(PI * p1 + (1 - PI) * p2)

    y = x @ w.T + b
    lvp = jnp.sum(glp(w, w_mu, w_sigma)) + jnp.sum(glp(b, b_mu, b_sigma))
    lp = jnp.sum(mix(w)) + jnp.sum(mix(b))
    return y, lp, lvp


def _make_inputs(key, B, IN, OUT):
    k = jax.random.split(key, 8)
    w_mu = jax.random.uniform(k[0], (OUT, IN), jnp.float32, -0.2, 0.2)
    w_rho = jax.random.uniform(k[1], (OUT, IN), jnp.float32, -5.0, -4.0)
    b_mu = jax.random.uniform(k[2], (OUT,), jnp.float32, -0.2, 0.2)
    b_rho = jax.random.uniform(k[3], (OUT,), jnp.float32, -5.0, -4.0)
    w_eps = jax.random.normal(k[4], (OUT, IN), jnp.float32)
    b_eps = jax.random.normal(k[5], (OUT,), jnp.float32)
    x = jax.random.normal(k[6], (B, IN), jnp.float32)
    return x, w_mu, w_rho, w_eps, b_mu, b_rho, b_eps


if __name__ == "__main__":
    key = jax.random.PRNGKey(0)
    key1, key2 = jax.random.split(key)

    # --- Case 1: small shapes consistent with BayesianLinear(32, 16), batch 8 ---
    args = _make_inputs(key1, B=8, IN=32, OUT=16)
    y, log_prior, log_var_post = bayesian_linear(*args)
    jax.block_until_ready((y, log_prior, log_var_post))
    y_ref, lp_ref, lvp_ref = _reference(*args)
    assert jnp.allclose(y, y_ref, atol=1e-4, rtol=1e-4)
    assert jnp.allclose(log_prior, lp_ref, atol=1e-2, rtol=1e-4)
    assert jnp.allclose(log_var_post, lvp_ref, atol=1e-2, rtol=1e-4)

    # --- Case 2: non-tile-aligned layer to exercise multi-tile grid + edge masks ---
    args2 = _make_inputs(key2, B=4, IN=200, OUT=300)
    y2, lp2, lvp2 = bayesian_linear(*args2, tile_out=128, tile_in=128)
    jax.block_until_ready((y2, lp2, lvp2))
    y2_ref, lp2_ref, lvp2_ref = _reference(*args2)
    assert jnp.allclose(y2, y2_ref, atol=2e-4, rtol=2e-4)
    assert jnp.allclose(lp2, lp2_ref, atol=1.0, rtol=1e-4)
    assert jnp.allclose(lvp2, lvp2_ref, atol=1.0, rtol=1e-4)

    print("KERNEL_OK")
</pallas_src>

<mosaic_0001>
module attributes {stable_mosaic.version = 11 : i64} {
  func.func @bayesian_linear_kernel(%arg0: i32, %arg1: i32, %arg2: memref<8x32xf32, #tpu.memory_space<vmem>>, %arg3: memref<16x32xf32, #tpu.memory_space<vmem>>, %arg4: memref<16x32xf32, #tpu.memory_space<vmem>>, %arg5: memref<16x32xf32, #tpu.memory_space<vmem>>, %arg6: memref<1x16xf32, #tpu.memory_space<vmem>>, %arg7: memref<1x16xf32, #tpu.memory_space<vmem>>, %arg8: memref<1x16xf32, #tpu.memory_space<vmem>>, %arg9: memref<8x16xf32, #tpu.memory_space<vmem>>, %arg10: memref<8x128xf32, #tpu.memory_space<vmem>>, %arg11: memref<8x128xf32, #tpu.memory_space<vmem>>, %arg12: memref<8x16xf32, #tpu.memory_space<vmem>>, %arg13: memref<1x32xf32, #tpu.memory_space<vmem>>, %arg14: memref<1x32xf32, #tpu.memory_space<vmem>>) attributes {dimension_semantics = [#tpu.dimension_semantics<parallel>, #tpu.dimension_semantics<arbitrary>], iteration_bounds = array<i64: 1, 1>, scalar_prefetch = 0 : i64, scratch_operands = 3 : i64, tpu.core_type = #tpu.core_type<tc>, window_params = [{transform_indices = @transform_0, window_bounds = array<i64: 8, 32>}, {transform_indices = @transform_1, window_bounds = array<i64: 16, 32>}, {transform_indices = @transform_2, window_bounds = array<i64: 16, 32>}, {transform_indices = @transform_3, window_bounds = array<i64: 16, 32>}, {transform_indices = @transform_4, window_bounds = array<i64: 1, 16>}, {transform_indices = @transform_5, window_bounds = array<i64: 1, 16>}, {transform_indices = @transform_6, window_bounds = array<i64: 1, 16>}, {transform_indices = @transform_7, window_bounds = array<i64: 8, 16>}, {transform_indices = @transform_8, window_bounds = array<i64: 8, 128>}, {transform_indices = @transform_9, window_bounds = array<i64: 8, 128>}]} {
    %c0 = arith.constant 0 : index
    %c0_0 = arith.constant 0 : index
    %0 = vector.load %arg3[%c0, %c0_0] : memref<16x32xf32, #tpu.memory_space<vmem>>, vector<16x32xf32>
    %c0_1 = arith.constant 0 : index
    %c0_2 = arith.constant 0 : index
    %1 = vector.load %arg4[%c0_1, %c0_2] : memref<16x32xf32, #tpu.memory_space<vmem>>, vector<16x32xf32>
    %c0_3 = arith.constant 0 : index
    %c0_4 = arith.constant 0 : index
    %2 = vector.load %arg5[%c0_3, %c0_4] : memref<16x32xf32, #tpu.memory_space<vmem>>, vector<16x32xf32>
    %cst = arith.constant 0.000000e+00 : f32
    %3 = vector.broadcast %cst : f32 to vector<16x32xf32>
    %4 = arith.maximumf %1, %3 : vector<16x32xf32>
    %5 = math.absf %1 : vector<16x32xf32>
    %cst_5 = arith.constant 0.000000e+00 : f32
    %6 = vector.broadcast %cst_5 : f32 to vector<16x32xf32>
    %7 = arith.subf %6, %5 : vector<16x32xf32>
    %8 = math.exp %7 : vector<16x32xf32>
    %9 = math.log1p %8 : vector<16x32xf32>
    %10 = arith.addf %4, %9 : vector<16x32xf32>
    %11 = arith.mulf %10, %2 : vector<16x32xf32>
    %12 = arith.addf %0, %11 : vector<16x32xf32>
    %c0_6 = arith.constant 0 : index
    %c0_7 = arith.constant 0 : index
    %13 = vector.load %arg2[%c0_6, %c0_7] : memref<8x32xf32, #tpu.memory_space<vmem>>, vector<8x32xf32>
    %cst_8 = arith.constant dense<0.000000e+00> : vector<8x16xf32>
    %14 = tpu.matmul %13, %12, %cst_8 {dimension_numbers = #tpu.dot_dimension_numbers<[1], [1], [0], [0], [0, 0, 1, 0], [], []>} : vector<8x32xf32>, vector<16x32xf32>, vector<8x16xf32> -> vector<8x16xf32>
    %c0_i32 = arith.constant 0 : i32
    %15 = arith.cmpi eq, %arg1, %c0_i32 : i32
    %16 = arith.extui %15 : i1 to i32
    %c0_i32_9 = arith.constant 0 : i32
    %17 = arith.cmpi ne, %16, %c0_i32_9 : i32
    scf.if %17 {
      %cst_32 = arith.constant 0.000000e+00 : f32
      %53 = vector.broadcast %cst_32 : f32 to vector<8x16xf32>
      %c0_33 = arith.constant 0 : index
      %c0_34 = arith.constant 0 : index
      %54 = vector.load %arg12[%c0_33, %c0_34] : memref<8x16xf32, #tpu.memory_space<vmem>>, vector<8x16xf32>
      tpu.vector_store %arg12[%c0_33, %c0_34], %53 {strides = array<i32>} : memref<8x16xf32, #tpu.memory_space<vmem>>, vector<8x16xf32>,
      %cst_35 = arith.constant 0.000000e+00 : f32
      %55 = vector.broadcast %cst_35 : f32 to vector<1x32xf32>
      %c0_36 = arith.constant 0 : index
      %c0_37 = arith.constant 0 : index
      %56 = vector.load %arg13[%c0_36, %c0_37] : memref<1x32xf32, #tpu.memory_space<vmem>>, vector<1x32xf32>
      tpu.vector_store %arg13[%c0_36, %c0_37], %55 {strides = array<i32>} : memref<1x32xf32, #tpu.memory_space<vmem>>, vector<1x32xf32>,
      %cst_38 = arith.constant 0.000000e+00 : f32
      %57 = vector.broadcast %cst_38 : f32 to vector<1x32xf32>
      %c0_39 = arith.constant 0 : index
      %c0_40 = arith.constant 0 : index
      %58 = vector.load %arg14[%c0_39, %c0_40] : memref<1x32xf32, #tpu.memory_space<vmem>>, vector<1x32xf32>
      tpu.vector_store %arg14[%c0_39, %c0_40], %57 {strides = array<i32>} : memref<1x32xf32, #tpu.memory_space<vmem>>, vector<1x32xf32>,
    } else {
    }
    %c0_10 = arith.constant 0 : index
    %c0_11 = arith.constant 0 : index
    %18 = vector.load %arg12[%c0_10, %c0_11] : memref<8x16xf32, #tpu.memory_space<vmem>>, vector<8x16xf32>
    %19 = arith.addf %18, %14 : vector<8x16xf32>
    %c0_12 = arith.constant 0 : index
    %c0_13 = arith.constant 0 : index
    %20 = vector.load %arg12[%c0_12, %c0_13] : memref<8x16xf32, #tpu.memory_space<vmem>>, vector<8x16xf32>
    tpu.vector_store %arg12[%c0_12, %c0_13], %19 {strides = array<i32>} : memref<8x16xf32, #tpu.memory_space<vmem>>, vector<8x16xf32>,
    %21 = math.log %10 : vector<16x32xf32>
    %cst_14 = arith.constant -0.918938517 : f32
    %22 = vector.broadcast %cst_14 : f32 to vector<16x32xf32>
    %23 = arith.subf %22, %21 : vector<16x32xf32>
    %cst_15 = arith.constant 5.000000e-01 : f32
    %24 = vector.broadcast %cst_15 : f32 to vector<16x32xf32>
    %25 = arith.mulf %24, %2 : vector<16x32xf32>
    %26 = arith.mulf %25, %2 : vector<16x32xf32>
    %27 = arith.subf %23, %26 : vector<16x32xf32>
    %28 = arith.mulf %12, %12 : vector<16x32xf32>
    %cst_16 = arith.constant 5.000000e-01 : f32
    %29 = vector.broadcast %cst_16 : f32 to vector<16x32xf32>
    %30 = arith.mulf %29, %28 : vector<16x32xf32>
    %cst_17 = arith.constant -1.6120857 : f32
    %31 = vector.broadcast %cst_17 : f32 to vector<16x32xf32>
    %32 = arith.subf %31, %30 : vector<16x32xf32>
    %cst_18 = arith.constant -81376.8984 : f32
    %33 = vector.broadcast %cst_18 : f32 to vector<16x32xf32>
    %34 = arith.mulf %33, %28 : vector<16x32xf32>
    %35 = math.exp %34 : vector<16x32xf32>
    %cst_19 = arith.constant 403.428802 : f32
    %36 = vector.broadcast %cst_19 : f32 to vector<16x32xf32>
    %37 = arith.mulf %36, %35 : vector<16x32xf32>
    %38 = math.log1p %37 : vector<16x32xf32>
    %39 = arith.addf %32, %38 : vector<16x32xf32>
    %c0_20 = arith.constant 0 : index
    %c0_21 = arith.constant 0 : index
    %40 = vector.load %arg13[%c0_20, %c0_21] : memref<1x32xf32, #tpu.memory_space<vmem>>, vector<1x32xf32>
    %cst_22 = arith.constant dense<0.000000e+00> : vector<32xf32>
    %41 = vector.multi_reduction <add>, %39, %cst_22 [0] : vector<16x32xf32> to vector<32xf32>
    %42 = vector.shape_cast %41 : vector<32xf32> to vector<1x32xf32>
    %43 = arith.addf %40, %42 : vector<1x32xf32>
    %c0_23 = arith.constant 0 : index
    %c0_24 = arith.constant 0 : index
    %44 = vector.load %arg13[%c0_23, %c0_24] : memref<1x32xf32, #tpu.memory_space<vmem>>, vector<1x32xf32>
    tpu.vector_store %arg13[%c0_23, %c0_24], %43 {strides = array<i32>} : memref<1x32xf32, #tpu.memory_space<vmem>>, vector<1x32xf32>,
    %c0_25 = arith.constant 0 : index
    %c0_26 = arith.constant 0 : index
    %45 = vector.load %arg14[%c0_25, %c0_26] : memref<1x32xf32, #tpu.memory_space<vmem>>, vector<1x32xf32>
    %cst_27 = arith.constant dense<0.000000e+00> : vector<32xf32>
    %46 = vector.multi_reduction <add>, %27, %cst_27 [0] : vector<16x32xf32> to vector<32xf32>
    %47 = vector.shape_cast %46 : vector<32xf32> to vector<1x32xf32>
    %48 = arith.addf %45, %47 : vector<1x32xf32>
    %c0_28 = arith.constant 0 : index
    %c0_29 = arith.constant 0 : index
    %49 = vector.load %arg14[%c0_28, %c0_29] : memref<1x32xf32, #tpu.memory_space<vmem>>, vector<1x32xf32>
    tpu.vector_store %arg14[%c0_28, %c0_29], %48 {strides = array<i32>} : memref<1x32xf32, #tpu.memory_space<vmem>>, vector<1x32xf32>,
    %c0_i32_30 = arith.constant 0 : i32
    %50 = arith.cmpi eq, %arg1, %c0_i32_30 : i32
    %51 = arith.extui %50 : i1 to i32
    %c0_i32_31 = arith.constant 0 : i32
    %52 = arith.cmpi ne, %51, %c0_i32_31 : i32
    scf.if %52 {
      %c0_32 = arith.constant 0 : index
      %c0_33 = arith.constant 0 : index
      %53 = vector.load %arg6[%c0_32, %c0_33] : memref<1x16xf32, #tpu.memory_space<vmem>>, vector<1x16xf32>
      %c0_34 = arith.constant 0 : index
      %c0_35 = arith.constant 0 : index
      %54 = vector.load %arg7[%c0_34, %c0_35] : memref<1x16xf32, #tpu.memory_space<vmem>>, vector<1x16xf32>
      %c0_36 = arith.constant 0 : index
      %c0_37 = arith.constant 0 : index
      %55 = vector.load %arg8[%c0_36, %c0_37] : memref<1x16xf32, #tpu.memory_space<vmem>>, vector<1x16xf32>
      %cst_38 = arith.constant 0.000000e+00 : f32
      %56 = vector.broadcast %cst_38 : f32 to vector<1x16xf32>
      %57 = arith.maximumf %54, %56 : vector<1x16xf32>
      %58 = math.absf %54 : vector<1x16xf32>
      %cst_39 = arith.constant 0.000000e+00 : f32
      %59 = vector.broadcast %cst_39 : f32 to vector<1x16xf32>
      %60 = arith.subf %59, %58 : vector<1x16xf32>
      %61 = math.exp %60 : vector<1x16xf32>
      %62 = math.log1p %61 : vector<1x16xf32>
      %63 = arith.addf %57, %62 : vector<1x16xf32>
      %64 = arith.mulf %63, %55 : vector<1x16xf32>
      %65 = arith.addf %53, %64 : vector<1x16xf32>
      %c0_40 = arith.constant 0 : index
      %c0_41 = arith.constant 0 : index
      %66 = vector.load %arg12[%c0_40, %c0_41] : memref<8x16xf32, #tpu.memory_space<vmem>>, vector<8x16xf32>
      %67 = vector.broadcast %65 : vector<1x16xf32> to vector<8x16xf32>
      %68 = arith.addf %66, %67 : vector<8x16xf32>
      %c0_42 = arith.constant 0 : index
      %c0_43 = arith.constant 0 : index
      %69 = vector.load %arg9[%c0_42, %c0_43] : memref<8x16xf32, #tpu.memory_space<vmem>>, vector<8x16xf32>
      tpu.vector_store %arg9[%c0_42, %c0_43], %68 {strides = array<i32>} : memref<8x16xf32, #tpu.memory_space<vmem>>, vector<8x16xf32>,
      %70 = math.log %63 : vector<1x16xf32>
      %cst_44 = arith.constant -0.918938517 : f32
      %71 = vector.broadcast %cst_44 : f32 to vector<1x16xf32>
      %72 = arith.subf %71, %70 : vector<1x16xf32>
      %cst_45 = arith.constant 5.000000e-01 : f32
      %73 = vector.broadcast %cst_45 : f32 to vector<1x16xf32>
      %74 = arith.mulf %73, %55 : vector<1x16xf32>
      %75 = arith.mulf %74, %55 : vector<1x16xf32>
      %76 = arith.subf %72, %75 : vector<1x16xf32>
      %77 = arith.mulf %65, %65 : vector<1x16xf32>
      %cst_46 = arith.constant 5.000000e-01 : f32
      %78 = vector.broadcast %cst_46 : f32 to vector<1x16xf32>
      %79 = arith.mulf %78, %77 : vector<1x16xf32>
      %cst_47 = arith.constant -1.6120857 : f32
      %80 = vector.broadcast %cst_47 : f32 to vector<1x16xf32>
      %81 = arith.subf %80, %79 : vector<1x16xf32>
      %cst_48 = arith.constant -81376.8984 : f32
      %82 = vector.broadcast %cst_48 : f32 to vector<1x16xf32>
      %83 = arith.mulf %82, %77 : vector<1x16xf32>
      %84 = math.exp %83 : vector<1x16xf32>
      %cst_49 = arith.constant 403.428802 : f32
      %85 = vector.broadcast %cst_49 : f32 to vector<1x16xf32>
      %86 = arith.mulf %85, %84 : vector<1x16xf32>
      %87 = math.log1p %86 : vector<1x16xf32>
      %88 = arith.addf %81, %87 : vector<1x16xf32>
      %c0_50 = arith.constant 0 : index
      %c0_51 = arith.constant 0 : index
      %89 = vector.load %arg13[%c0_50, %c0_51] : memref<1x32xf32, #tpu.memory_space<vmem>>, vector<1x32xf32>
      %90 = vector.shape_cast %89 : vector<1x32xf32> to vector<1x1x32xf32>
      %cst_52 = arith.constant dense<0.000000e+00> : vector<1xf32>
      %91 = vector.multi_reduction <add>, %90, %cst_52 [1, 2] : vector<1x1x32xf32> to vector<1xf32>
      %92 = vector.shape_cast %91 : vector<1xf32> to vector<1x1x1xf32>
      %93 = vector.extract %92[0, 0, 0] : f32 from vector<1x1x1xf32>
      %94 = vector.shape_cast %88 : vector<1x16xf32> to vector<1x1x16xf32>
      %cst_53 = arith.constant dense<0.000000e+00> : vector<1xf32>
      %95 = vector.multi_reduction <add>, %94, %cst_53 [1, 2] : vector<1x1x16xf32> to vector<1xf32>
      %96 = vector.shape_cast %95 : vector<1xf32> to vector<1x1x1xf32>
      %97 = vector.extract %96[0, 0, 0] : f32 from vector<1x1x1xf32>
      %98 = arith.addf %93, %97 : f32
      %c0_54 = arith.constant 0 : index
      %c0_55 = arith.constant 0 : index
      %99 = vector.load %arg14[%c0_54, %c0_55] : memref<1x32xf32, #tpu.memory_space<vmem>>, vector<1x32xf32>
      %100 = vector.shape_cast %99 : vector<1x32xf32> to vector<1x1x32xf32>
      %cst_56 = arith.constant dense<0.000000e+00> : vector<1xf32>
      %101 = vector.multi_reduction <add>, %100, %cst_56 [1, 2] : vector<1x1x32xf32> to vector<1xf32>
      %102 = vector.shape_cast %101 : vector<1xf32> to vector<1x1x1xf32>
      %103 = vector.extract %102[0, 0, 0] : f32 from vector<1x1x1xf32>
      %104 = vector.shape_cast %76 : vector<1x16xf32> to vector<1x1x16xf32>
      %cst_57 = arith.constant dense<0.000000e+00> : vector<1xf32>
      %105 = vector.multi_reduction <add>, %104, %cst_57 [1, 2] : vector<1x1x16xf32> to vector<1xf32>
      %106 = vector.shape_cast %105 : vector<1xf32> to vector<1x1x1xf32>
      %107 = vector.extract %106[0, 0, 0] : f32 from vector<1x1x1xf32>
      %108 = arith.addf %103, %107 : f32
      %109 = vector.broadcast %98 : f32 to vector<8x128xf32>
      %c0_58 = arith.constant 0 : index
      %c0_59 = arith.constant 0 : index
      %110 = vector.load %arg10[%c0_58, %c0_59] : memref<8x128xf32, #tpu.memory_space<vmem>>, vector<8x128xf32>
      tpu.vector_store %arg10[%c0_58, %c0_59], %109 {strides = array<i32>} : memref<8x128xf32, #tpu.memory_space<vmem>>, vector<8x128xf32>,
      %111 = vector.broadcast %108 : f32 to vector<8x128xf32>
      %c0_60 = arith.constant 0 : index
      %c0_61 = arith.constant 0 : index
      %112 = vector.load %arg11[%c0_60, %c0_61] : memref<8x128xf32, #tpu.memory_space<vmem>>, vector<8x128xf32>
      tpu.vector_store %arg11[%c0_60, %c0_61], %111 {strides = array<i32>} : memref<8x128xf32, #tpu.memory_space<vmem>>, vector<8x128xf32>,
    } else {
    }
    return
  }
  func.func @transform_0(%arg0: i32, %arg1: i32) -> (i32, i32) {
    %c0_i32 = arith.constant 0 : i32
    %c0_i32_0 = arith.constant 0 : i32
    return %c0_i32, %arg1 : i32, i32
  }
  func.func @transform_1(%arg0: i32, %arg1: i32) -> (i32, i32) {
    %c0_i32 = arith.constant 0 : i32
    return %arg0, %arg1 : i32, i32
  }
  func.func @transform_2(%arg0: i32, %arg1: i32) -> (i32, i32) {
    %c0_i32 = arith.constant 0 : i32
    return %arg0, %arg1 : i32, i32
  }
  func.func @transform_3(%arg0: i32, %arg1: i32) -> (i32, i32) {
    %c0_i32 = arith.constant 0 : i32
    return %arg0, %arg1 : i32, i32
  }
  func.func @transform_4(%arg0: i32, %arg1: i32) -> (i32, i32) {
    %c0_i32 = arith.constant 0 : i32
    %c0_i32_0 = arith.constant 0 : i32
    return %c0_i32, %arg0 : i32, i32
  }
  func.func @transform_5(%arg0: i32, %arg1: i32) -> (i32, i32) {
    %c0_i32 = arith.constant 0 : i32
    %c0_i32_0 = arith.constant 0 : i32
    return %c0_i32, %arg0 : i32, i32
  }
  func.func @transform_6(%arg0: i32, %arg1: i32) -> (i32, i32) {
    %c0_i32 = arith.constant 0 : i32
    %c0_i32_0 = arith.constant 0 : i32
    return %c0_i32, %arg0 : i32, i32
  }
  func.func @transform_7(%arg0: i32, %arg1: i32) -> (i32, i32) {
    %c0_i32 = arith.constant 0 : i32
    %c0_i32_0 = arith.constant 0 : i32
    return %c0_i32, %arg0 : i32, i32
  }
  func.func @transform_8(%arg0: i32, %arg1: i32) -> (i32, i32) {
    %c0_i32 = arith.constant 0 : i32
    %c0_i32_0 = arith.constant 0 : i32
    return %arg0, %c0_i32 : i32, i32
  }
  func.func @transform_9(%arg0: i32, %arg1: i32) -> (i32, i32) {
    %c0_i32 = arith.constant 0 : i32
    %c0_i32_0 = arith.constant 0 : i32
    return %arg0, %c0_i32 : i32, i32
  }
}

</mosaic_0001>

<llo_original>
// kernel: tpu_custom_call.1
$region0: #{tpu_custom_call.1}
  #allocation0 [shape = 'u32[]', space=smem, size = 0x4, offset = 0x4, fixed_abs, tag = 'smem constant byte address 0x4 - core index']
  #allocation1 [shape = 'u32[144,128]{1,0:T(1,128)}', space=vmem, size = 0x12000, scoped, tag = 'internal scratch']
  #allocation2 [shape = 'f32[8,16]{1,0:T(8,128)}', space=vmem, size = 0x1000, scoped, tag = 'scratch operand']
  #allocation3 [shape = 'f32[1,32]{1,0:T(1,128)}', space=vmem, size = 0x200, scoped, tag = 'scratch operand']
  #allocation4 [shape = 'f32[1,32]{1,0:T(1,128)}', space=vmem, size = 0x200, scoped, tag = 'scratch operand']
  %s0 = inlined_call_operand.hbm [shape: f32[8,32], index: 0, kind: input, shape index: {}]
  %s1 = inlined_call_operand.hbm [shape: f32[16,32], index: 1, kind: input, shape index: {}]
  %s2 = inlined_call_operand.hbm [shape: f32[16,32], index: 2, kind: input, shape index: {}]
  %s3 = inlined_call_operand.hbm [shape: f32[16,32], index: 3, kind: input, shape index: {}]
  %s4 = inlined_call_operand.vmem [shape: f32[1,16], index: 4, kind: input, shape index: {}]
  %s5 = inlined_call_operand.vmem [shape: f32[1,16], index: 5, kind: input, shape index: {}]
  %s6 = inlined_call_operand.vmem [shape: f32[1,16], index: 6, kind: input, shape index: {}]
  %s7 = inlined_call_operand.hbm [shape: f32[8,16], index: 7, kind: output, shape index: {0}]
  %s8 = inlined_call_operand.hbm [shape: f32[8,128], index: 8, kind: output, shape index: {1}]
  %s9 = inlined_call_operand.hbm [shape: f32[8,128], index: 9, kind: output, shape index: {2}]
  %10 = xla_tuple %s7, %s8, %s9
  %s11 = sld [smem:[#allocation0]]
  $region78: #{tpu_custom_call.1} parent=0
    _
  %s13 = ssub.s32 1, %s11
  %s14 = scalar_select 0, %s13, %s11
  $region1: #{tpu_custom_call.1} parent=0
    #allocation5 [shape = 'u8[4096]{0}', space=vmem, size = 0x1000, scoped, tag = 'input window, operand 0, single buffered']
    #allocation6 [shape = 's32[1]{0}', space=sflag, size = 0x4, scoped, tag = 'scoped memory for tpu_custom_call.1']
    #allocation7 [shape = 's32[1]{0}', space=sflag, size = 0x4, scoped, tag = 'scoped memory for tpu_custom_call.1']
    #allocation8 [shape = 'u8[8192]{0}', space=vmem, size = 0x2000, scoped, tag = 'input window, operand 1, single buffered']
    #allocation9 [shape = 's32[1]{0}', space=sflag, size = 0x4, scoped, tag = 'scoped memory for tpu_custom_call.1']
    #allocation10 [shape = 'u8[8192]{0}', space=vmem, size = 0x2000, scoped, tag = 'input window, operand 2, single buffered']
    #allocation11 [shape = 'u8[8192]{0}', space=vmem, size = 0x2000, scoped, tag = 'input window, operand 3, single buffered']
    #allocation12 [shape = 's32[1]{0}', space=sflag, size = 0x4, scoped, tag = 'scoped memory for tpu_custom_call.1']
    #allocation13 [shape = 'u8[4096]{0}', space=vmem, size = 0x1000, scoped, tag = 'output window, operand 0, single buffered']
    #allocation14 [shape = 'u8[4096]{0}', space=vmem, size = 0x1000, scoped, tag = 'output window, operand 1, single buffered']
    #allocation15 [shape = 's32[1]{0}', space=sflag, size = 0x4, scoped, tag = 'scoped memory for tpu_custom_call.1']
    #allocation16 [shape = 'u8[4096]{0}', space=vmem, size = 0x1000, scoped, tag = 'output window, operand 2, single buffered']
    %15 = vsyncpa [#allocation6], 0
    %16 = vsyncpa [#allocation9], 0
    %17 = vsyncpa [#allocation12], 0
    %18 = vsyncpa [#allocation7], 0
    %19 = vsyncpa [#allocation15], 0
    // Predicated region
    $region2: #{tpu_custom_call.1} parent=1 // pred_check
      _
    $region3: #{tpu_custom_call.1} parent=1 // pred_check_branch
      %21 = sbr.rel (0) target = $region5
    $region4: #{tpu_custom_call.1} parent=1 // pred_region
      %s23 = ssub.s32 128, 128
      %24 = vsyncadd [#allocation6], %s23
      %s26 = sshll.u32 [#allocation5], 4
      %s27 = int_to_ptr.vmem [resolvable:$true] %s26
      %29 = dma.hbm_to_vmem [thread:$0]  %s0, 128, %s27, [#allocation6]
    $region5: #{tpu_custom_call.1} parent=1 // pred_fallthru
      _
    // Predicated region
    $region6: #{tpu_custom_call.1} parent=1 // pred_check
      _
    $region7: #{tpu_custom_call.1} parent=1 // pred_check_branch
      %31 = sbr.rel (0) target = $region9
    $region8: #{tpu_custom_call.1} parent=1 // pred_region
      %s33 = ssub.s32 256, 256
      %34 = vsyncadd [#allocation9], %s33
      %s35 = sshll.u32 [#allocation8], 4
      %s36 = int_to_ptr.vmem [resolvable:$true] %s35
      %41 = dma.hbm_to_vmem [thread:$0]  %s1, 256, %s36, [#allocation9], 128, 128, 8
    $region9: #{tpu_custom_call.1} parent=1 // pred_fallthru
      _
    // Predicated region
    $region10: #{tpu_custom_call.1} parent=1 // pred_check
      _
    $region11: #{tpu_custom_call.1} parent=1 // pred_check_branch
      %43 = sbr.rel (0) target = $region13
    $region12: #{tpu_custom_call.1} parent=1 // pred_region
      %s45 = ssub.s32 256, 256
      %46 = vsyncadd [#allocation9], %s45
      %s47 = sshll.u32 [#allocation10], 4
      %s48 = int_to_ptr.vmem [resolvable:$true] %s47
      %53 = dma.hbm_to_vmem [thread:$0]  %s2, 256, %s48, [#allocation9], 128, 128, 8
    $region13: #{tpu_custom_call.1} parent=1 // pred_fallthru
      _
    // Predicated region
    $region14: #{tpu_custom_call.1} parent=1 // pred_check
      _
    $region15: #{tpu_custom_call.1} parent=1 // pred_check_branch
      %55 = sbr.rel (0) target = $region17
    $region16: #{tpu_custom_call.1} parent=1 // pred_region
      %s57 = ssub.s32 256, 256
      %58 = vsyncadd [#allocation12], %s57
      %s59 = sshll.u32 [#allocation11], 4
      %s60 = int_to_ptr.vmem [resolvable:$true] %s59
      %65 = dma.hbm_to_vmem [thread:$0]  %s3, 256, %s60, [#allocation12], 128, 128, 8
    $region17: #{tpu_custom_call.1} parent=1 // pred_fallthru
      _
    // Predicated region
    $region18: #{tpu_custom_call.1} parent=1 // pred_check
      _
    $region19: #{tpu_custom_call.1} parent=1 // pred_check_branch
      %67 = sbr.rel (0) target = $region21
    $region20: #{tpu_custom_call.1} parent=1 // pred_region
      _
    $region21: #{tpu_custom_call.1} parent=1 // pred_fallthru
      _
    // Predicated region
    $region22: #{tpu_custom_call.1} parent=1 // pred_check
      _
    $region23: #{tpu_custom_call.1} parent=1 // pred_check_branch
      %69 = sbr.rel (0) target = $region25
    $region24: #{tpu_custom_call.1} parent=1 // pred_region
      _
    $region25: #{tpu_custom_call.1} parent=1 // pred_fallthru
      _
    // Predicated region
    $region26: #{tpu_custom_call.1} parent=1 // pred_check
      _
    $region27: #{tpu_custom_call.1} parent=1 // pred_check_branch
      %71 = sbr.rel (0) target = $region29
    $region28: #{tpu_custom_call.1} parent=1 // pred_region
      _
    $region29: #{tpu_custom_call.1} parent=1 // pred_fallthru
      _
    // Predicated region
    $region30: #{tpu_custom_call.1} parent=1 // pred_check
      _
    $region31: #{tpu_custom_call.1} parent=1 // pred_check_branch
      %73 = sbr.rel (0) target = $region33
    $region32: #{tpu_custom_call.1} parent=1 // pred_region
      %74 = dma.done [#allocation6], 128
    $region33: #{tpu_custom_call.1} parent=1 // pred_fallthru
      _
    // Predicated region
    $region34: #{tpu_custom_call.1} parent=1 // pred_check
      _
    $region35: #{tpu_custom_call.1} parent=1 // pred_check_branch
      %76 = sbr.rel (0) target = $region37
    $region36: #{tpu_custom_call.1} parent=1 // pred_region
      %77 = dma.done [#allocation9], 256
    $region37: #{tpu_custom_call.1} parent=1 // pred_fallthru
      _
    // Predicated region
    $region38: #{tpu_custom_call.1} parent=1 // pred_check
      _
    $region39: #{tpu_custom_call.1} parent=1 // pred_check_branch
      %79 = sbr.rel (0) target = $region41
    $region40: #{tpu_custom_call.1} parent=1 // pred_region
      %80 = dma.done [#allocation9], 256
    $region41: #{tpu_custom_call.1} parent=1 // pred_fallthru
      _
    // Predicated region
    $region42: #{tpu_custom_call.1} parent=1 // pred_check
      _
    $region43: #{tpu_custom_call.1} parent=1 // pred_check_branch
      %82 = sbr.rel (0) target = $region45
    $region44: #{tpu_custom_call.1} parent=1 // pred_region
      %83 = dma.done [#allocation12], 256
    $region45: #{tpu_custom_call.1} parent=1 // pred_fallthru
      _
    %v84 = vld [vmem:[#allocation8] sm:$0xff]
    %v85 = vld [vmem:[#allocation8 + $0x8] sm:$0xff]
    %v86 = vld [vmem:[#allocation10] sm:$0xff]
    %v87 = vld [vmem:[#allocation10 + $0x8] sm:$0xff]
    %v88 = vld [vmem:[#allocation11] sm:$0xff]
    %v89 = vld [vmem:[#allocation11 + $0x8] sm:$0xff]
    %v90 = vmax.f32 %v86, 0.0
    %v91 = vmax.f32 %v87, 0.0
    %v92 = vand.u32 2147483647, %v86
    %v93 = vand.u32 2147483647, %v87
    %v94 = vsub.f32 0.0, %v92
    %v95 = vsub.f32 0.0, %v93
    %v96 = vmul.f32 %v94, 1.442695
    %v97 = vpow.pop %v96
    %v98 = vmul.f32 %v95, 1.442695
    %v99 = vpow.pop %v98
    %v100 = vadd.f32 %v97, 1.0
    %v101 = vlog2.pop %v100
    %v102 = vmul.f32 %v101, 0.6931472
    %v103 = vmul.f32 -0.5, %v97
    %v104 = vadd.f32 %v103, 1.0
    %v105 = vmul.f32 %v104, %v97
    %v106 = vand.u32 2147483647, %v97
    %vm107 = vcmp.lt.f32.partialorder %v106, 0.0004427343
    %v108 = vsel %vm107, %v105, %v102
    %v109 = vadd.f32 %v99, 1.0
    %v110 = vlog2.pop %v109
    %v111 = vmul.f32 %v110, 0.6931472
    %v112 = vmul.f32 -0.5, %v99
    %v113 = vadd.f32 %v112, 1.0
    %v114 = vmul.f32 %v113, %v99
    %v115 = vand.u32 2147483647, %v99
    %vm116 = vcmp.lt.f32.partialorder %v115, 0.0004427343
    %v117 = vsel %vm116, %v114, %v111
    %v118 = vadd.f32 %v90, %v108
    %v119 = vadd.f32 %v91, %v117
    %v120 = vmul.f32 %v118, %v88
    %v121 = vmul.f32 %v119, %v89
    %v122 = vadd.f32 %v84, %v120
    %v123 = vadd.f32 %v85, %v121
    %v124 = vld [vmem:[#allocation5] sm:$0xff]
    %vm125 = vcmask 261120
    %v127 = vsel %vm125, %v124, 0
    %v130 = vsel %vm125, %v122, 0
    %v133 = vsel %vm125, %v123, 0
    %135 = vmatprep.subr.mxu0 0.0
    %136 = vmatpush1.xpose.msra.mxu0 0.0
    %137 = vmatprep.subr.mxu0 0.0
    %138 = vmatpush1.xpose.msra.mxu0 0.0
    %139 = vmatprep.subr.mxu0 0.0
    %140 = vmatpush1.xpose.msra.mxu0 0.0
    %141 = vmatprep.subr.mxu0 0.0
    %142 = vmatpush1.xpose.msra.mxu0 0.0
    %143 = vmatprep.subr.mxu0 0.0
    %144 = vmatpush1.xpose.msra.mxu0 0.0
    %145 = vmatprep.subr.mxu0 0.0
    %146 = vmatpush1.xpose.msra.mxu0 0.0
    %147 = vmatprep.subr.mxu0 0.0
    %148 = vmatpush1.xpose.msra.mxu0 0.0
    %149 = vmatprep.subr.mxu0 0.0
    %150 = vmatpush1.xpose.msra.mxu0 0.0
    %151 = vmatprep.subr.mxu0 0.0
    %152 = vmatpush1.xpose.msra.mxu0 0.0
    %153 = vmatprep.subr.mxu0 0.0
    %154 = vmatpush1.xpose.msra.mxu0 0.0
    %155 = vmatprep.subr.mxu0 0.0
    %156 = vmatpush1.xpose.msra.mxu0 0.0
    %157 = vmatprep.subr.mxu0 0.0
    %158 = vmatpush1.xpose.msra.mxu0 0.0
    %159 = vmatprep.subr.mxu0 0.0
    %160 = vmatpush1.xpose.msra.mxu0 0.0
    %161 = vmatprep.subr.mxu0 0.0
    %162 = vmatpush1.xpose.msra.mxu0 0.0
    %163 = vmatprep.subr.mxu0 0.0
    %164 = vmatpush1.xpose.msra.mxu0 %v133
    %165 = vmatprep.subr.mxu0 0.0
    %166 = vmatpush1.xpose.msra.mxu0 %v130
    %167 = vmatprep.subr.mxu0 0.0
    %168 = vmatpush2.xpose.msra.mxu0 0.0
    %169 = vmatprep.subr.mxu0 0.0
    %170 = vmatpush2.xpose.msra.mxu0 0.0
    %171 = vmatprep.subr.mxu0 0.0
    %172 = vmatpush2.xpose.msra.mxu0 0.0
    %173 = vmatprep.subr.mxu0 0.0
    %174 = vmatpush2.xpose.msra.mxu0 0.0
    %175 = vmatprep.subr.mxu0 0.0
    %176 = vmatpush2.xpose.msra.mxu0 0.0
    %177 = vmatprep.subr.mxu0 0.0
    %178 = vmatpush2.xpose.msra.mxu0 0.0
    %179 = vmatprep.subr.mxu0 0.0
    %180 = vmatpush2.xpose.msra.mxu0 0.0
    %181 = vmatprep.subr.mxu0 0.0
    %182 = vmatpush2.xpose.msra.mxu0 0.0
    %183 = vmatprep.subr.mxu0 0.0
    %184 = vmatpush2.xpose.msra.mxu0 0.0
    %185 = vmatprep.subr.mxu0 0.0
    %186 = vmatpush2.xpose.msra.mxu0 0.0
    %187 = vmatprep.subr.mxu0 0.0
    %188 = vmatpush2.xpose.msra.mxu0 0.0
    %189 = vmatprep.subr.mxu0 0.0
    %190 = vmatpush2.xpose.msra.mxu0 0.0
    %191 = vmatprep.subr.mxu0 0.0
    %192 = vmatpush2.xpose.msra.mxu0 0.0
    %193 = vmatprep.subr.mxu0 0.0
    %194 = vmatpush2.xpose.msra.mxu0 0.0
    %195 = vmatprep.subr.mxu0 0.0
    %196 = vmatpush2.xpose.msra.mxu0 0.0
    %197 = vmatprep.subr.mxu0 0.0
    %198 = vmatpush2.xpose.msra.mxu0 0.0
    %199 = vmatprep.mubr.f32.mxu0 0.0
    %200 = vmatmul.mubr.f32.gmra.mxu0 %v127
    %v201 = vpop.f32.mrf.mxu0
    %v202 = vadd.f32 0.0, %v201
    %v203 = vpop.f32.mrf.mxu0
    %204 = vdwg.mxu0
    %p205 = scmp.eq.s32.totalorder 0, 0
    // Predicated region
    $region46: #{tpu_custom_call.1} parent=1 // pred_check
      %p206 = pneg %p205
    $region47: #{tpu_custom_call.1} parent=1 // pred_check_branch
      %208 = sbr.rel (%p206) target = $region49
    $region48: #{tpu_custom_call.1} parent=1 // pred_region
      %vm209 = vcmask 130048
      %210 = vst.msk [vmem:[#allocation2] sm:$0xff] %vm209, 0.0
      %vm211 = vcmask 253952
      %212 = vst.msk [vmem:[#allocation3] sm:$0x1] %vm211, 0.0
      %213 = vst.msk [vmem:[#allocation4] sm:$0x1] %vm211, 0.0
    $region49: #{tpu_custom_call.1} parent=1 // pred_fallthru
      _
    %v214 = vld [vmem:[#allocation2] sm:$0xff]
    %v215 = vadd.f32 %v214, %v202
    %vm216 = vcmask 130048
    %217 = vst.msk [vmem:[#allocation2] sm:$0xff] %vm216, %v215
    %v218 = vlog2.pop %v118
    %v219 = vmul.f32 %v218, 0.6931472
    %v220 = vlog2.pop %v119
    %v221 = vmul.f32 %v220, 0.6931472
    %v222 = vsub.f32 -0.9189385, %v219
    %v223 = vsub.f32 -0.9189385, %v221
    %v224 = vmul.f32 %v88, 0.5
    %v225 = vmul.f32 %v89, 0.5
    %v226 = vmul.f32 %v224, %v88
    %v227 = vmul.f32 %v225, %v89
    %v228 = vsub.f32 %v222, %v226
    %v229 = vsub.f32 %v223, %v227
    %v230 = vmul.f32 %v122, %v122
    %v231 = vmul.f32 %v123, %v123
    %v232 = vmul.f32 %v230, 0.5
    %v233 = vmul.f32 %v231, 0.5
    %v234 = vsub.f32 -1.6120857, %v232
    %v235 = vsub.f32 -1.6120857, %v233
    %v236 = vmul.f32 %v230, -81376.9
    %v237 = vmul.f32 %v231, -81376.9
    %v238 = vmul.f32 %v236, 1.442695
    %v239 = vpow.pop %v238
    %v240 = vmul.f32 %v237, 1.442695
    %v241 = vpow.pop %v240
    %v242 = vmul.f32 %v239, 403.4288
    %v243 = vmul.f32 %v241, 403.4288
    %v244 = vadd.f32 %v242, 1.0
    %v245 = vlog2.pop %v244
    %v246 = vmul.f32 %v245, 0.6931472
    %v247 = vmul.f32 -0.5, %v242
    %v248 = vadd.f32 %v247, 1.0
    %v249 = vmul.f32 %v248, %v242
    %v250 = vand.u32 2147483647, %v242
    %vm251 = vcmp.lt.f32.partialorder %v250, 0.0004427343
    %v252 = vsel %vm251, %v249, %v246
    %v253 = vadd.f32 %v243, 1.0
    %v254 = vlog2.pop %v253
    %v255 = vmul.f32 %v254, 0.6931472
    %v256 = vmul.f32 -0.5, %v243
    %v257 = vadd.f32 %v256, 1.0
    %v258 = vmul.f32 %v257, %v243
    %v259 = vand.u32 2147483647, %v243
    %vm260 = vcmp.lt.f32.partialorder %v259, 0.0004427343
    %v261 = vsel %vm260, %v258, %v255
    %v262 = vadd.f32 %v234, %v252
    %v263 = vadd.f32 %v235, %v261
    %v264 = vld [vmem:[#allocation3] sm:$0x1]
    %v265 = vsel %vm125, %v262, 0.0
    %v266 = vsel %vm125, %v263, 0.0
    %v267 = vadd.f32 %v265, %v266
    %v268 = vrot.slane %v267, 4
    %v269 = vadd.f32 %v267, %v268
    %v270 = vrot.slane %v269, 2
    %v271 = vadd.f32 %v269, %v270
    %v272 = vrot.slane %v271, 1
    %v273 = vadd.f32 %v271, %v272
    %v274 = vadd.f32 %v264, %v273
    %vm275 = vcmask 253952
    %276 = vst.msk [vmem:[#allocation3] sm:$0x1] %vm275, %v274
    %v277 = vld [vmem:[#allocation4] sm:$0x1]
    %v278 = vsel %vm125, %v228, 0.0
    %v279 = vsel %vm125, %v229, 0.0
    %v280 = vadd.f32 %v278, %v279
    %v281 = vrot.slane %v280, 4
    %v282 = vadd.f32 %v280, %v281
    %v283 = vrot.slane %v282, 2
    %v284 = vadd.f32 %v282, %v283
    %v285 = vrot.slane %v284, 1
    %v286 = vadd.f32 %v284, %v285
    %v287 = vadd.f32 %v277, %v286
    %288 = vst.msk [vmem:[#allocation4] sm:$0x1] %vm275, %v287
    // Predicated region
    $region50: #{tpu_custom_call.1} parent=1 // pred_check
      %p289 = pneg %p205
    $region51: #{tpu_custom_call.1} parent=1 // pred_check_branch
      %291 = sbr.rel (%p289) target = $region53
    $region52: #{tpu_custom_call.1} parent=1 // pred_region
      %v292 = vld [vmem:[%s4] sm:$0x1]
      %v293 = vld [vmem:[%s5] sm:$0x1]
      %v294 = vld [vmem:[%s6] sm:$0x1]
      %v295 = vmax.f32 %v293, 0.0
      %v296 = vand.u32 2147483647, %v293
      %v297 = vsub.f32 0.0, %v296
      %v298 = vmul.f32 %v297, 1.442695
      %v299 = vpow.pop %v298
      %v300 = vadd.f32 %v299, 1.0
      %v301 = vlog2.pop %v300
      %v302 = vmul.f32 %v301, 0.6931472
      %v303 = vmul.f32 -0.5, %v299
      %v304 = vadd.f32 %v303, 1.0
      %v305 = vmul.f32 %v304, %v299
      %v306 = vand.u32 2147483647, %v299
      %vm307 = vcmp.lt.f32.partialorder %v306, 0.0004427343
      %v308 = vsel %vm307, %v305, %v302
      %v309 = vadd.f32 %v295, %v308
      %v310 = vmul.f32 %v309, %v294
      %v311 = vadd.f32 %v292, %v310
      %v312 = vld [vmem:[#allocation2] sm:$0xff]
      %v314 = vlaneseq
      %v315 = vshrl.u32 %v314, 7
      %v316 = vsub.s32 0, %v315
      %v317 = vrot.slane %v311, %v316
      %v319 = vadd.f32 %v312, %v317
      %320 = vst.msk [vmem:[#allocation13] sm:$0xff] %vm216, %v319
      %v321 = vlog2.pop %v309
      %v322 = vmul.f32 %v321, 0.6931472
      %v323 = vsub.f32 -0.9189385, %v322
      %v324 = vmul.f32 %v294, 0.5
      %v325 = vmul.f32 %v324, %v294
      %v326 = vsub.f32 %v323, %v325
      %v327 = vmul.f32 %v311, %v311
      %v328 = vmul.f32 %v327, 0.5
      %v329 = vsub.f32 -1.6120857, %v328
      %v330 = vmul.f32 %v327, -81376.9
      %v331 = vmul.f32 %v330, 1.442695
      %v332 = vpow.pop %v331
      %v333 = vmul.f32 %v332, 403.4288
      %v334 = vadd.f32 %v333, 1.0
      %v335 = vlog2.pop %v334
      %v336 = vmul.f32 %v335, 0.6931472
      %v337 = vmul.f32 -0.5, %v333
      %v338 = vadd.f32 %v337, 1.0
      %v339 = vmul.f32 %v338, %v333
      %v340 = vand.u32 2147483647, %v333
      %vm341 = vcmp.lt.f32.partialorder %v340, 0.0004427343
      %v342 = vsel %vm341, %v339, %v336
      %v343 = vadd.f32 %v329, %v342
      %v344 = vld [vmem:[#allocation3] sm:$0x1]
      %v345 = vsel %vm275, %v344, 0.0
      %346 = vadd.xlane.f32.xlu0 %v345
      %v347 = vpop.xlane.xlu0 %346
      %v348 = vrot.slane %v347, 4
      %v349 = vadd.f32 %v347, %v348
      %v350 = vrot.slane %v349, 2
      %v351 = vadd.f32 %v349, %v350
      %v352 = vrot.slane %v351, 1
      %v353 = vadd.f32 %v351, %v352
      %s354 = vtos %v353
      %vm355 = vcmask 122880
      %v356 = vsel %vm355, %v343, 0.0
      %357 = vadd.xlane.f32.xlu0 %v356
      %v358 = vpop.xlane.xlu0 %357
      %v359 = vrot.slane %v358, 4
      %v360 = vadd.f32 %v358, %v359
      %v361 = vrot.slane %v360, 2
      %v362 = vadd.f32 %v360, %v361
      %v363 = vrot.slane %v362, 1
      %v364 = vadd.f32 %v362, %v363
      %s365 = vtos %v364
      %s366 = sadd.f32 %s354, %s365
      %v367 = vld [vmem:[#allocation4] sm:$0x1]
      %v368 = vsel %vm275, %v367, 0.0
      %369 = vadd.xlane.f32.xlu0 %v368
      %v370 = vpop.xlane.xlu0 %369
      %v371 = vrot.slane %v370, 4
      %v372 = vadd.f32 %v370, %v371
      %v373 = vrot.slane %v372, 2
      %v374 = vadd.f32 %v372, %v373
      %v375 = vrot.slane %v374, 1
      %v376 = vadd.f32 %v374, %v375
      %s377 = vtos %v376
      %v378 = vsel %vm355, %v326, 0.0
      %379 = vadd.xlane.f32.xlu0 %v378
      %v380 = vpop.xlane.xlu0 %379
      %v381 = vrot.slane %v380, 4
      %v382 = vadd.f32 %v380, %v381
      %v383 = vrot.slane %v382, 2
      %v384 = vadd.f32 %v382, %v383
      %v385 = vrot.slane %v384, 1
      %v386 = vadd.f32 %v384, %v385
      %s387 = vtos %v386
      %s388 = sadd.f32 %s377, %s387
      %v389 = vstv %s366
      %390 = vst [vmem:[#allocation14] sm:$0xff] %v389
      %v391 = vstv %s388
      %392 = vst [vmem:[#allocation16] sm:$0xff] %v391
    $region53: #{tpu_custom_call.1} parent=1 // pred_fallthru
      _
    // Predicated region
    $region54: #{tpu_custom_call.1} parent=1 // pred_check
      _
    $region55: #{tpu_custom_call.1} parent=1 // pred_check_branch
      %394 = sbr.rel (0) target = $region57
    $region56: #{tpu_custom_call.1} parent=1 // pred_region
      %s396 = ssub.s32 128, 128
      %397 = vsyncadd [#allocation7], %s396
      %s399 = sshll.u32 [#allocation13], 4
      %s400 = int_to_ptr.vmem [resolvable:$true] %s399
      %402 = dma.vmem_to_hbm [thread:$0]  %s400, 128, %s7, [#allocation7]
    $region57: #{tpu_custom_call.1} parent=1 // pred_fallthru
      _
    // Predicated region
    $region58: #{tpu_custom_call.1} parent=1 // pred_check
      _
    $region59: #{tpu_custom_call.1} parent=1 // pred_check_branch
      %404 = sbr.rel (0) target = $region61
    $region60: #{tpu_custom_call.1} parent=1 // pred_region
      %s406 = ssub.s32 128, 128
      %407 = vsyncadd [#allocation15], %s406
      %s409 = sshll.u32 [#allocation14], 4
      %s410 = int_to_ptr.vmem [resolvable:$true] %s409
      %412 = dma.vmem_to_hbm [thread:$0]  %s410, 128, %s8, [#allocation15]
    $region61: #{tpu_custom_call.1} parent=1 // pred_fallthru
      _
    // Predicated region
    $region62: #{tpu_custom_call.1} parent=1 // pred_check
      _
    $region63: #{tpu_custom_call.1} parent=1 // pred_check_branch
      %414 = sbr.rel (0) target = $region65
    $region64: #{tpu_custom_call.1} parent=1 // pred_region
      %s416 = ssub.s32 128, 128
      %417 = vsyncadd [#allocation15], %s416
      %s419 = sshll.u32 [#allocation16], 4
      %s420 = int_to_ptr.vmem [resolvable:$true] %s419
      %422 = dma.vmem_to_hbm [thread:$0]  %s420, 128, %s9, [#allocation15]
    $region65: #{tpu_custom_call.1} parent=1 // pred_fallthru
      _
    // Predicated region
    $region66: #{tpu_custom_call.1} parent=1 // pred_check
      _
    $region67: #{tpu_custom_call.1} parent=1 // pred_check_branch
      %424 = sbr.rel (0) target = $region69
    $region68: #{tpu_custom_call.1} parent=1 // pred_region
      %425 = dma.done [#allocation7], 128
    $region69: #{tpu_custom_call.1} parent=1 // pred_fallthru
      _
    // Predicated region
    $region70: #{tpu_custom_call.1} parent=1 // pred_check
      _
    $region71: #{tpu_custom_call.1} parent=1 // pred_check_branch
      %427 = sbr.rel (0) target = $region73
    $region72: #{tpu_custom_call.1} parent=1 // pred_region
      %428 = dma.done [#allocation15], 128
    $region73: #{tpu_custom_call.1} parent=1 // pred_fallthru
      _
    // Predicated region
    $region74: #{tpu_custom_call.1} parent=1 // pred_check
      _
    $region75: #{tpu_custom_call.1} parent=1 // pred_check_branch
      %430 = sbr.rel (0) target = $region77
    $region76: #{tpu_custom_call.1} parent=1 // pred_region
      %431 = dma.done [#allocation15], 128
    $region77: #{tpu_custom_call.1} parent=1 // pred_fallthru
      _
    %432 = vsyncpa [#allocation6], 1
    %433 = vsyncpa [#allocation9], 1
    %434 = vsyncpa [#allocation12], 1
    %435 = vsyncpa [#allocation7], 1
    %436 = vsyncpa [#allocation15], 1

</llo_original>
